<compile_context>
chip_gen: v7x
topology: tpu7x:2x2x1
jax: 0.10.0
libtpu: 0.0.40
codegen_flags: <defaults>
</compile_context>

<pallas_src>
import functools
import math

import jax
import jax.numpy as jnp
from jax import lax
from jax.experimental import pallas as pl
from jax.experimental.pallas import tpu as pltpu

_NEG_BIG = -1e30


def _mlm_kernel(x_ref, tgt_ref, w1_ref, b1_ref, g_ref, beta_ref, w2_ref, b2_ref,
                out_ref,
                h_s, m_s, l_s, tl_s,
                *, hidden_actual):
    j = pl.program_id(1)
    nv = pl.num_programs(1)

    # ---- once per token tile (first vocab step): linear1 + gelu + layernorm ----
    @pl.when(j == 0)
    def _():
        x = x_ref[...]                                                    # [tm, Hp] bf16
        h = jnp.dot(x, w1_ref[...], preferred_element_type=jnp.float32) + b1_ref[...]
        # UER gelu: x * 0.5 * (1 + erf(x / sqrt(2)))
        h = h * 0.5 * (1.0 + lax.erf(h * (1.0 / math.sqrt(2.0))))

        # UER LayerNorm: gamma * (x - mean) / (std + eps) + beta, unbiased std.
        # Padded hidden lanes are excluded from the statistics.
        Hp = h.shape[-1]
        col = lax.broadcasted_iota(jnp.int32, (1, Hp), 1)
        hmask = (col < hidden_actual).astype(jnp.float32)                 # [1, Hp]
        mean = jnp.sum(h * hmask, axis=-1, keepdims=True) / hidden_actual
        centered = (h - mean) * hmask
        var = jnp.sum(centered * centered, axis=-1, keepdims=True) / (hidden_actual - 1)
        h_ln = g_ref[...] * (h - mean) / (jnp.sqrt(var) + 1e-6) + beta_ref[...]
        h_s[...] = (h_ln * hmask).astype(jnp.bfloat16)

        # init per-lane online-softmax carries
        m_s[...] = jnp.full_like(m_s, _NEG_BIG)
        l_s[...] = jnp.zeros_like(l_s)
        tl_s[...] = jnp.zeros_like(tl_s)

    # ---- every vocab step: one (tm, tv) logits block, folded elementwise ----
    logits = jnp.dot(h_s[...], w2_ref[...],
                     preferred_element_type=jnp.float32) + b2_ref[...]    # [tm, tv] f32
    tv = logits.shape[-1]
    G = tv // 128                                                         # lane-groups

    tgt = tgt_ref[...]                                                    # [tm, 1] int32
    tloc = tgt - j * tv                                                   # target col within block
    col128 = lax.broadcasted_iota(jnp.int32, (1, 128), 1)

    # per-lane max of this block over its G lane-groups (pure VPU, no XLU)
    bm = logits[:, 0:128]
    for g in range(1, G):
        bm = jnp.maximum(bm, logits[:, g * 128:(g + 1) * 128])

    m_old = m_s[...]
    m_new = jnp.maximum(m_old, bm)
    acc = l_s[...] * jnp.exp(m_old - m_new)
    t_acc = tl_s[...]
    for g in range(G):
        blk = logits[:, g * 128:(g + 1) * 128]
        acc = acc + jnp.exp(blk - m_new)
        # exactly one vocab column over the whole stream matches the target;
        # padded vocab columns (index >= V) can never match.
        t_acc = t_acc + jnp.where(col128 == (tloc - g * 128), blk, 0.0)
    m_s[...] = m_new
    l_s[...] = acc
    tl_s[...] = t_acc

    # ---- finalize: single cross-lane combine, lane-dense per-tile partials ----
    @pl.when(j == nv - 1)
    def _():
        mask = (tgt_ref[...] > 0).astype(jnp.float32)                     # [tm, 1]
        m_row = jnp.max(m_s[...], axis=-1, keepdims=True)                 # global max
        l_row = jnp.sum(l_s[...] * jnp.exp(m_s[...] - m_row),
                        axis=-1, keepdims=True)                           # sum-exp
        t_row = jnp.sum(tl_s[...], axis=-1, keepdims=True)                # target logit
        nll = m_row + jnp.log(l_row) - t_row                              # -log p[target]
        # correct <=> target logit equals the global max.  torch.argmax uses a
        # first-index tie-break, so exact float ties can differ (negligible).
        corr = (t_row == m_row).astype(jnp.float32) * mask

        loss_sum = jnp.sum(nll * mask)
        corr_sum = jnp.sum(corr)
        cnt_sum = jnp.sum(mask)

        lane = lax.broadcasted_iota(jnp.int32, out_ref.shape, 2)
        out_ref[...] = jnp.where(lane == 0, loss_sum,
                                 jnp.where(lane == 1, corr_sum,
                                           jnp.where(lane == 2, cnt_sum, 0.0)))


def _round_up(a, m):
    return (a + m - 1) // m * m


def mlm_target_forward(memory_bank, tgt, params, *, tile_tokens=512, tile_vocab=1024):
    """memory_bank: [B, S, H], tgt: [B, S] int -> (loss, correct, denominator).

    tile_tokens=512 is a good default on v5e/v7x; raise to 768-1024 (multiple of
    256) on v6e -- the streamed W2 matmul's arithmetic intensity is
    ~tile_tokens flops/byte.
    """
    B, S, Hd = memory_bank.shape
    w1, b1, gamma, beta, w2, b2 = params
    V = w2.shape[1]

    N = B * S
    tm = min(tile_tokens, _round_up(N, 8))
    Np = _round_up(N, tm)
    Hp = _round_up(Hd, 128)
    tv = min(tile_vocab, _round_up(V, 128))
    Vp = _round_up(V, tv)
    nt, nv = Np // tm, Vp // tv

    # pad + cast (padded token rows carry tgt = 0 -> masked out exactly like
    # the dynamic `tgt > 0` row selection of the PyTorch code)
    x = memory_bank.reshape(N, Hd).astype(jnp.bfloat16)
    x = jnp.pad(x, ((0, Np - N), (0, Hp - Hd)))
    t2 = jnp.pad(tgt.reshape(N, 1).astype(jnp.int32), ((0, Np - N), (0, 0)))

    w1p = jnp.pad(w1.astype(jnp.bfloat16), ((0, Hp - Hd), (0, Hp - Hd)))
    b1p = jnp.pad(b1.astype(jnp.float32).reshape(1, Hd), ((0, 0), (0, Hp - Hd)))
    gp = jnp.pad(gamma.astype(jnp.float32).reshape(1, Hd), ((0, 0), (0, Hp - Hd)))
    bp = jnp.pad(beta.astype(jnp.float32).reshape(1, Hd), ((0, 0), (0, Hp - Hd)))

    # W2 pre-blocked to a contiguous (nv, Hp, tv) layout so each vocab block is
    # a single contiguous DMA (instead of Hp strided rows of tv*2 bytes).
    w2p = jnp.pad(w2.astype(jnp.bfloat16), ((0, Hp - Hd), (0, Vp - V)))
    w2b = jnp.transpose(w2p.reshape(Hp, nv, tv), (1, 0, 2))
    # padded vocab columns get a hugely negative bias -> never affect softmax
    b2p = jnp.pad(b2.astype(jnp.float32).reshape(1, V), ((0, 0), (0, Vp - V)),
                  constant_values=_NEG_BIG)

    kernel = functools.partial(_mlm_kernel, hidden_actual=Hd)
    const = lambda i, j: (0, 0)

    # VMEM footprint (double-buffered pipeline blocks + scratch + logits temp),
    # capped at 64 MiB so the same tile choices stay legal on v7x.
    vmem_need = (
        2 * tm * Hp * 2          # x tile (bf16), double-buffered
        + 2 * tm * 128 * 4       # tgt tile (lane-padded int32)
        + 2 * Hp * Hp * 2        # W1 (bf16)
        + 2 * 3 * 8 * Hp * 4     # b1 / gamma / beta (sublane-padded f32)
        + 2 * Hp * tv * 2        # W2 vocab block (bf16)
        + 2 * 8 * tv * 4         # b2 block
        + 2 * 8 * 128 * 4        # output block
        + tm * Hp * 2            # h_s scratch (bf16)
        + 3 * tm * 128 * 4       # per-lane carries m / l / tl
        + 2 * tm * tv * 4        # logits temporary (f32) + slack
        + 2 * tm * Hp * 4        # head temporaries (f32)
    )
    vmem_limit = int(min(max(vmem_need + (8 << 20), 32 << 20), 64 << 20))

    partials = pl.pallas_call(
        kernel,
        out_shape=jax.ShapeDtypeStruct((nt, 8, 128), jnp.float32),
        grid_spec=pltpu.PrefetchScalarGridSpec(
            num_scalar_prefetch=0,
            grid=(nt, nv),
            in_specs=[
                pl.BlockSpec((tm, Hp), lambda i, j: (i, 0)),        # x tile
                pl.BlockSpec((tm, 1), lambda i, j: (i, 0)),         # targets tile
                # TODO(synk): mark W1/b1/gamma/beta single-buffered
                # (pipeline_mode=pl.Buffered(1)) once broadly supported; they
                # are grid-constant so double-buffering only wastes VMEM.
                pl.BlockSpec((Hp, Hp), const),                      # W1 (resident)
                pl.BlockSpec((1, Hp), const),                       # b1
                pl.BlockSpec((1, Hp), const),                       # gamma
                pl.BlockSpec((1, Hp), const),                       # beta
                pl.BlockSpec((None, Hp, tv), lambda i, j: (j, 0, 0)),  # W2 block (contiguous)
                pl.BlockSpec((1, tv), lambda i, j: (0, j)),         # b2 block
            ],
            out_specs=pl.BlockSpec((1, 8, 128), lambda i, j: (i, 0, 0)),
            scratch_shapes=[
                pltpu.VMEM((tm, Hp), jnp.bfloat16),   # h = LN(gelu(xW1+b1))
                pltpu.VMEM((tm, 128), jnp.float32),   # per-lane running max
                pltpu.VMEM((tm, 128), jnp.float32),   # per-lane running sum-exp
                pltpu.VMEM((tm, 128), jnp.float32),   # per-lane target logit
            ]),
        compiler_params=pltpu.CompilerParams(
            # token axis "parallel" -> megacore / v7x dual-TC sharding; only the
            # streamed vocab axis carries state and is "arbitrary".
            dimension_semantics=("parallel", "arbitrary"),
            vmem_limit_bytes=vmem_limit),
    )(x, t2, w1p, b1p, gp, bp, w2b, b2p)

    loss_sum = jnp.sum(partials[:, 0, 0])
    correct = jnp.sum(partials[:, 0, 1])
    count = jnp.sum(partials[:, 0, 2])
    denominator = count + 1e-6             # torch: output_mlm.size(0) + 1e-06
    loss = loss_sum / denominator
    return loss, correct, denominator


def init_params(key, hidden_size, vocab_size):
    k1, k2 = jax.random.split(key)
    w1 = 0.02 * jax.random.normal(k1, (hidden_size, hidden_size), jnp.float32)
    b1 = jnp.zeros((hidden_size,), jnp.float32)
    gamma = jnp.ones((hidden_size,), jnp.float32)
    beta = jnp.zeros((hidden_size,), jnp.float32)
    w2 = 0.02 * jax.random.normal(k2, (hidden_size, vocab_size), jnp.float32)
    b2 = jnp.zeros((vocab_size,), jnp.float32)
    return (w1, b1, gamma, beta, w2, b2)


if __name__ == "__main__":
    B, S, Hd, V = 2, 8, 32, 64
    key = jax.random.PRNGKey(0)
    kx, kt, kp = jax.random.split(key, 3)

    memory_bank = jax.random.normal(kx, (B, S, Hd), jnp.float32)
    # targets in [0, V); zeros mark non-masked positions (excluded from the loss)
    tgt = jax.random.randint(kt, (B, S), 0, V, jnp.int32)
    params = init_params(kp, Hd, V)

    loss, correct, denominator = mlm_target_forward(memory_bank, tgt, params)
    jax.block_until_ready((loss, correct, denominator))
    print("KERNEL_OK")
</pallas_src>

<mosaic_0001>
module attributes {stable_mosaic.version = 11 : i64} {
  func.func @_mlm_kernel(%arg0: i32, %arg1: i32, %arg2: memref<16x128xbf16, #tpu.memory_space<vmem>>, %arg3: memref<16x1xi32, #tpu.memory_space<vmem>>, %arg4: memref<128x128xbf16, #tpu.memory_space<vmem>>, %arg5: memref<1x128xf32, #tpu.memory_space<vmem>>, %arg6: memref<1x128xf32, #tpu.memory_space<vmem>>, %arg7: memref<1x128xf32, #tpu.memory_space<vmem>>, %arg8: memref<1x128x128xbf16, #tpu.memory_space<vmem>>, %arg9: memref<1x128xf32, #tpu.memory_space<vmem>>, %arg10: memref<1x8x128xf32, #tpu.memory_space<vmem>>, %arg11: memref<16x128xbf16, #tpu.memory_space<vmem>>, %arg12: memref<16x128xf32, #tpu.memory_space<vmem>>, %arg13: memref<16x128xf32, #tpu.memory_space<vmem>>, %arg14: memref<16x128xf32, #tpu.memory_space<vmem>>) attributes {dimension_semantics = [#tpu.dimension_semantics<parallel>, #tpu.dimension_semantics<arbitrary>], iteration_bounds = array<i64: 1, 1>, scalar_prefetch = 0 : i64, scratch_operands = 4 : i64, tpu.core_type = #tpu.core_type<tc>, window_params = [{transform_indices = @transform_0, window_bounds = array<i64: 16, 128>}, {transform_indices = @transform_1, window_bounds = array<i64: 16, 1>}, {pipeline_mode = #tpu.pipeline_mode<synchronous>, transform_indices = @transform_2, window_bounds = array<i64: 128, 128>}, {pipeline_mode = #tpu.pipeline_mode<synchronous>, transform_indices = @transform_3, window_bounds = array<i64: 1, 128>}, {pipeline_mode = #tpu.pipeline_mode<synchronous>, transform_indices = @transform_4, window_bounds = array<i64: 1, 128>}, {pipeline_mode = #tpu.pipeline_mode<synchronous>, transform_indices = @transform_5, window_bounds = array<i64: 1, 128>}, {transform_indices = @transform_6, window_bounds = array<i64: 1, 128, 128>}, {transform_indices = @transform_7, window_bounds = array<i64: 1, 128>}, {transform_indices = @transform_8, window_bounds = array<i64: 1, 8, 128>}]} {
    %c0_i32 = arith.constant 0 : i32
    %0 = arith.cmpi eq, %arg1, %c0_i32 : i32
    %1 = arith.extui %0 : i1 to i32
    %c0_i32_0 = arith.constant 0 : i32
    %2 = arith.cmpi ne, %1, %c0_i32_0 : i32
    scf.if %2 {
      %c0_25 = arith.constant 0 : index
      %c0_26 = arith.constant 0 : index
      %39 = vector.load %arg2[%c0_25, %c0_26] : memref<16x128xbf16, #tpu.memory_space<vmem>>, vector<16x128xbf16>
      %c0_27 = arith.constant 0 : index
      %c0_28 = arith.constant 0 : index
      %40 = vector.load %arg4[%c0_27, %c0_28] : memref<128x128xbf16, #tpu.memory_space<vmem>>, vector<128x128xbf16>
      %cst_29 = arith.constant dense<0.000000e+00> : vector<16x128xf32>
      %41 = tpu.matmul %39, %40, %cst_29 {dimension_numbers = #tpu.dot_dimension_numbers<[1], [0], [0], [1], [0, 0, 1, 1], [], []>} : vector<16x128xbf16>, vector<128x128xbf16>, vector<16x128xf32> -> vector<16x128xf32>
      %c0_30 = arith.constant 0 : index
      %c0_31 = arith.constant 0 : index
      %42 = vector.load %arg5[%c0_30, %c0_31] : memref<1x128xf32, #tpu.memory_space<vmem>>, vector<1x128xf32>
      %43 = vector.broadcast %42 : vector<1x128xf32> to vector<16x128xf32>
      %44 = arith.addf %41, %43 : vector<16x128xf32>
      %cst_32 = arith.constant 5.000000e-01 : f32
      %45 = vector.broadcast %cst_32 : f32 to vector<16x128xf32>
      %46 = arith.mulf %44, %45 : vector<16x128xf32>
      %cst_33 = arith.constant 0.707106769 : f32
      %47 = vector.broadcast %cst_33 : f32 to vector<16x128xf32>
      %48 = arith.mulf %44, %47 : vector<16x128xf32>
      %49 = math.erf %48 : vector<16x128xf32>
      %cst_34 = arith.constant 1.000000e+00 : f32
      %50 = vector.broadcast %cst_34 : f32 to vector<16x128xf32>
      %51 = arith.addf %50, %49 : vector<16x128xf32>
      %52 = arith.mulf %46, %51 : vector<16x128xf32>
      %53 = tpu.iota {dimensions = array<i32: 1>} : vector<1x128xi32>
      %c32_i32 = arith.constant 32 : i32
      %54 = vector.broadcast %c32_i32 : i32 to vector<1x128xi32>
      %55 = arith.cmpi slt, %53, %54 : vector<1x128xi32>
      %56 = arith.extui %55 : vector<1x128xi1> to vector<1x128xi32>
      %57 = arith.sitofp %56 : vector<1x128xi32> to vector<1x128xf32>
      %58 = vector.broadcast %57 : vector<1x128xf32> to vector<16x128xf32>
      %59 = arith.mulf %52, %58 : vector<16x128xf32>
      %cst_35 = arith.constant dense<0.000000e+00> : vector<16xf32>
      %60 = vector.multi_reduction <add>, %59, %cst_35 [1] : vector<16x128xf32> to vector<16xf32>
      %61 = vector.shape_cast %60 : vector<16xf32> to vector<16x1xf32>
      %cst_36 = arith.constant 3.200000e+01 : f32
      %62 = vector.broadcast %cst_36 : f32 to vector<16x1xf32>
      %63 = arith.divf %61, %62 : vector<16x1xf32>
      %64 = vector.broadcast %63 : vector<16x1xf32> to vector<16x128xf32>
      %65 = arith.subf %52, %64 : vector<16x128xf32>
      %66 = vector.broadcast %57 : vector<1x128xf32> to vector<16x128xf32>
      %67 = arith.mulf %65, %66 : vector<16x128xf32>
      %68 = arith.mulf %67, %67 : vector<16x128xf32>
      %cst_37 = arith.constant dense<0.000000e+00> : vector<16xf32>
      %69 = vector.multi_reduction <add>, %68, %cst_37 [1] : vector<16x128xf32> to vector<16xf32>
      %70 = vector.shape_cast %69 : vector<16xf32> to vector<16x1xf32>
      %cst_38 = arith.constant 3.100000e+01 : f32
      %71 = vector.broadcast %cst_38 : f32 to vector<16x1xf32>
      %72 = arith.divf %70, %71 : vector<16x1xf32>
      %c0_39 = arith.constant 0 : index
      %c0_40 = arith.constant 0 : index
      %73 = vector.load %arg6[%c0_39, %c0_40] : memref<1x128xf32, #tpu.memory_space<vmem>>, vector<1x128xf32>
      %74 = vector.broadcast %63 : vector<16x1xf32> to vector<16x128xf32>
      %75 = arith.subf %52, %74 : vector<16x128xf32>
      %76 = vector.broadcast %73 : vector<1x128xf32> to vector<16x128xf32>
      %77 = arith.mulf %76, %75 : vector<16x128xf32>
      %78 = math.sqrt %72 : vector<16x1xf32>
      %cst_41 = arith.constant 9.99999997E-7 : f32
      %79 = vector.broadcast %cst_41 : f32 to vector<16x1xf32>
      %80 = arith.addf %78, %79 : vector<16x1xf32>
      %81 = vector.broadcast %80 : vector<16x1xf32> to vector<16x128xf32>
      %82 = arith.divf %77, %81 : vector<16x128xf32>
      %c0_42 = arith.constant 0 : index
      %c0_43 = arith.constant 0 : index
      %83 = vector.load %arg7[%c0_42, %c0_43] : memref<1x128xf32, #tpu.memory_space<vmem>>, vector<1x128xf32>
      %84 = vector.broadcast %83 : vector<1x128xf32> to vector<16x128xf32>
      %85 = arith.addf %82, %84 : vector<16x128xf32>
      %86 = vector.broadcast %57 : vector<1x128xf32> to vector<16x128xf32>
      %87 = arith.mulf %85, %86 : vector<16x128xf32>
      %88 = arith.truncf %87 : vector<16x128xf32> to vector<16x128xbf16>
      %c0_44 = arith.constant 0 : index
      %c0_45 = arith.constant 0 : index
      %89 = vector.load %arg11[%c0_44, %c0_45] : memref<16x128xbf16, #tpu.memory_space<vmem>>, vector<16x128xbf16>
      tpu.vector_store %arg11[%c0_44, %c0_45], %88 {strides = array<i32>} : memref<16x128xbf16, #tpu.memory_space<vmem>>, vector<16x128xbf16>,
      %cst_46 = arith.constant -1.000000e+30 : f32
      %90 = vector.broadcast %cst_46 : f32 to vector<16x128xf32>
      %c0_47 = arith.constant 0 : index
      %c0_48 = arith.constant 0 : index
      %91 = vector.load %arg12[%c0_47, %c0_48] : memref<16x128xf32, #tpu.memory_space<vmem>>, vector<16x128xf32>
      tpu.vector_store %arg12[%c0_47, %c0_48], %90 {strides = array<i32>} : memref<16x128xf32, #tpu.memory_space<vmem>>, vector<16x128xf32>,
      %cst_49 = arith.constant 0.000000e+00 : f32
      %92 = vector.broadcast %cst_49 : f32 to vector<16x128xf32>
      %c0_50 = arith.constant 0 : index
      %c0_51 = arith.constant 0 : index
      %93 = vector.load %arg13[%c0_50, %c0_51] : memref<16x128xf32, #tpu.memory_space<vmem>>, vector<16x128xf32>
      tpu.vector_store %arg13[%c0_50, %c0_51], %92 {strides = array<i32>} : memref<16x128xf32, #tpu.memory_space<vmem>>, vector<16x128xf32>,
      %cst_52 = arith.constant 0.000000e+00 : f32
      %94 = vector.broadcast %cst_52 : f32 to vector<16x128xf32>
      %c0_53 = arith.constant 0 : index
      %c0_54 = arith.constant 0 : index
      %95 = vector.load %arg14[%c0_53, %c0_54] : memref<16x128xf32, #tpu.memory_space<vmem>>, vector<16x128xf32>
      tpu.vector_store %arg14[%c0_53, %c0_54], %94 {strides = array<i32>} : memref<16x128xf32, #tpu.memory_space<vmem>>, vector<16x128xf32>,
    } else {
    }
    %c0 = arith.constant 0 : index
    %c0_1 = arith.constant 0 : index
    %3 = vector.load %arg11[%c0, %c0_1] : memref<16x128xbf16, #tpu.memory_space<vmem>>, vector<16x128xbf16>
    %c0_2 = arith.constant 0 : index
    %c0_3 = arith.constant 0 : index
    %c0_4 = arith.constant 0 : index
    %4 = vector.load %arg8[%c0_2, %c0_3, %c0_4] : memref<1x128x128xbf16, #tpu.memory_space<vmem>>, vector<1x128x128xbf16>
    %5 = vector.shape_cast %4 : vector<1x128x128xbf16> to vector<128x128xbf16>
    %cst = arith.constant dense<0.000000e+00> : vector<16x128xf32>
    %6 = tpu.matmul %3, %5, %cst {dimension_numbers = #tpu.dot_dimension_numbers<[1], [0], [0], [1], [0, 0, 1, 1], [], []>} : vector<16x128xbf16>, vector<128x128xbf16>, vector<16x128xf32> -> vector<16x128xf32>
    %c0_5 = arith.constant 0 : index
    %c0_6 = arith.constant 0 : index
    %7 = vector.load %arg9[%c0_5, %c0_6] : memref<1x128xf32, #tpu.memory_space<vmem>>, vector<1x128xf32>
    %8 = vector.broadcast %7 : vector<1x128xf32> to vector<16x128xf32>
    %9 = arith.addf %6, %8 : vector<16x128xf32>
    %c0_7 = arith.constant 0 : index
    %c0_8 = arith.constant 0 : index
    %10 = vector.load %arg3[%c0_7, %c0_8] : memref<16x1xi32, #tpu.memory_space<vmem>>, vector<16x1xi32>
    %c128_i32 = arith.constant 128 : i32
    %11 = arith.muli %arg1, %c128_i32 : i32
    %12 = vector.broadcast %11 : i32 to vector<16x1xi32>
    %13 = arith.subi %10, %12 : vector<16x1xi32>
    %14 = tpu.iota {dimensions = array<i32: 1>} : vector<1x128xi32>
    %c0_9 = arith.constant 0 : index
    %c0_10 = arith.constant 0 : index
    %15 = vector.load %arg12[%c0_9, %c0_10] : memref<16x128xf32, #tpu.memory_space<vmem>>, vector<16x128xf32>
    %16 = arith.maximumf %15, %9 : vector<16x128xf32>
    %c0_11 = arith.constant 0 : index
    %c0_12 = arith.constant 0 : index
    %17 = vector.load %arg13[%c0_11, %c0_12] : memref<16x128xf32, #tpu.memory_space<vmem>>, vector<16x128xf32>
    %18 = arith.subf %15, %16 : vector<16x128xf32>
    %19 = math.exp %18 : vector<16x128xf32>
    %20 = arith.mulf %17, %19 : vector<16x128xf32>
    %c0_13 = arith.constant 0 : index
    %c0_14 = arith.constant 0 : index
    %21 = vector.load %arg14[%c0_13, %c0_14] : memref<16x128xf32, #tpu.memory_space<vmem>>, vector<16x128xf32>
    %22 = arith.subf %9, %16 : vector<16x128xf32>
    %23 = math.exp %22 : vector<16x128xf32>
    %24 = arith.addf %20, %23 : vector<16x128xf32>
    %c0_i32_15 = arith.constant 0 : i32
    %25 = vector.broadcast %c0_i32_15 : i32 to vector<16x1xi32>
    %26 = arith.subi %13, %25 : vector<16x1xi32>
    %27 = vector.broadcast %14 : vector<1x128xi32> to vector<16x128xi32>
    %28 = vector.broadcast %26 : vector<16x1xi32> to vector<16x128xi32>
    %29 = arith.cmpi eq, %27, %28 : vector<16x128xi32>
    %cst_16 = arith.constant 0.000000e+00 : f32
    %30 = vector.broadcast %cst_16 : f32 to vector<16x128xf32>
    %31 = arith.select %29, %9, %30 : vector<16x128xi1>, vector<16x128xf32>
    %32 = arith.addf %21, %31 : vector<16x128xf32>
    %c0_17 = arith.constant 0 : index
    %c0_18 = arith.constant 0 : index
    %33 = vector.load %arg12[%c0_17, %c0_18] : memref<16x128xf32, #tpu.memory_space<vmem>>, vector<16x128xf32>
    tpu.vector_store %arg12[%c0_17, %c0_18], %16 {strides = array<i32>} : memref<16x128xf32, #tpu.memory_space<vmem>>, vector<16x128xf32>,
    %c0_19 = arith.constant 0 : index
    %c0_20 = arith.constant 0 : index
    %34 = vector.load %arg13[%c0_19, %c0_20] : memref<16x128xf32, #tpu.memory_space<vmem>>, vector<16x128xf32>
    tpu.vector_store %arg13[%c0_19, %c0_20], %24 {strides = array<i32>} : memref<16x128xf32, #tpu.memory_space<vmem>>, vector<16x128xf32>,
    %c0_21 = arith.constant 0 : index
    %c0_22 = arith.constant 0 : index
    %35 = vector.load %arg14[%c0_21, %c0_22] : memref<16x128xf32, #tpu.memory_space<vmem>>, vector<16x128xf32>
    tpu.vector_store %arg14[%c0_21, %c0_22], %32 {strides = array<i32>} : memref<16x128xf32, #tpu.memory_space<vmem>>, vector<16x128xf32>,
    %c0_i32_23 = arith.constant 0 : i32
    %36 = arith.cmpi eq, %arg1, %c0_i32_23 : i32
    %37 = arith.extui %36 : i1 to i32
    %c0_i32_24 = arith.constant 0 : i32
    %38 = arith.cmpi ne, %37, %c0_i32_24 : i32
    scf.if %38 {
      %c0_25 = arith.constant 0 : index
      %c0_26 = arith.constant 0 : index
      %39 = vector.load %arg3[%c0_25, %c0_26] : memref<16x1xi32, #tpu.memory_space<vmem>>, vector<16x1xi32>
      %c0_i32_27 = arith.constant 0 : i32
      %40 = vector.broadcast %c0_i32_27 : i32 to vector<16x1xi32>
      %41 = arith.cmpi sgt, %39, %40 : vector<16x1xi32>
      %42 = arith.extui %41 : vector<16x1xi1> to vector<16x1xi32>
      %43 = arith.sitofp %42 : vector<16x1xi32> to vector<16x1xf32>
      %c0_28 = arith.constant 0 : index
      %c0_29 = arith.constant 0 : index
      %44 = vector.load %arg12[%c0_28, %c0_29] : memref<16x128xf32, #tpu.memory_space<vmem>>, vector<16x128xf32>
      %cst_30 = arith.constant dense<0xFF800000> : vector<16xf32>
      %45 = vector.multi_reduction <maximumf>, %44, %cst_30 [1] : vector<16x128xf32> to vector<16xf32>
      %46 = vector.shape_cast %45 : vector<16xf32> to vector<16x1xf32>
      %c0_31 = arith.constant 0 : index
      %c0_32 = arith.constant 0 : index
      %47 = vector.load %arg13[%c0_31, %c0_32] : memref<16x128xf32, #tpu.memory_space<vmem>>, vector<16x128xf32>
      %c0_33 = arith.constant 0 : index
      %c0_34 = arith.constant 0 : index
      %48 = vector.load %arg12[%c0_33, %c0_34] : memref<16x128xf32, #tpu.memory_space<vmem>>, vector<16x128xf32>
      %49 = vector.broadcast %46 : vector<16x1xf32> to vector<16x128xf32>
      %50 = arith.subf %48, %49 : vector<16x128xf32>
      %51 = math.exp %50 : vector<16x128xf32>
      %52 = arith.mulf %47, %51 : vector<16x128xf32>
      %cst_35 = arith.constant dense<0.000000e+00> : vector<16xf32>
      %53 = vector.multi_reduction <add>, %52, %cst_35 [1] : vector<16x128xf32> to vector<16xf32>
      %54 = vector.shape_cast %53 : vector<16xf32> to vector<16x1xf32>
      %c0_36 = arith.constant 0 : index
      %c0_37 = arith.constant 0 : index
      %55 = vector.load %arg14[%c0_36, %c0_37] : memref<16x128xf32, #tpu.memory_space<vmem>>, vector<16x128xf32>
      %cst_38 = arith.constant dense<0.000000e+00> : vector<16xf32>
      %56 = vector.multi_reduction <add>, %55, %cst_38 [1] : vector<16x128xf32> to vector<16xf32>
      %57 = vector.shape_cast %56 : vector<16xf32> to vector<16x1xf32>
      %58 = math.log %54 : vector<16x1xf32>
      %59 = arith.addf %46, %58 : vector<16x1xf32>
      %60 = arith.subf %59, %57 : vector<16x1xf32>
      %61 = arith.cmpf oeq, %57, %46 : vector<16x1xf32>
      %62 = arith.extui %61 : vector<16x1xi1> to vector<16x1xi32>
      %63 = arith.sitofp %62 : vector<16x1xi32> to vector<16x1xf32>
      %64 = arith.mulf %63, %43 : vector<16x1xf32>
      %65 = arith.mulf %60, %43 : vector<16x1xf32>
      %66 = vector.shape_cast %65 : vector<16x1xf32> to vector<1x16x1xf32>
      %cst_39 = arith.constant dense<0.000000e+00> : vector<1xf32>
      %67 = vector.multi_reduction <add>, %66, %cst_39 [1, 2] : vector<1x16x1xf32> to vector<1xf32>
      %68 = vector.shape_cast %67 : vector<1xf32> to vector<1x1x1xf32>
      %69 = vector.extract %68[0, 0, 0] : f32 from vector<1x1x1xf32>
      %70 = vector.shape_cast %64 : vector<16x1xf32> to vector<1x16x1xf32>
      %cst_40 = arith.constant dense<0.000000e+00> : vector<1xf32>
      %71 = vector.multi_reduction <add>, %70, %cst_40 [1, 2] : vector<1x16x1xf32> to vector<1xf32>
      %72 = vector.shape_cast %71 : vector<1xf32> to vector<1x1x1xf32>
      %73 = vector.extract %72[0, 0, 0] : f32 from vector<1x1x1xf32>
      %74 = vector.shape_cast %43 : vector<16x1xf32> to vector<1x16x1xf32>
      %cst_41 = arith.constant dense<0.000000e+00> : vector<1xf32>
      %75 = vector.multi_reduction <add>, %74, %cst_41 [1, 2] : vector<1x16x1xf32> to vector<1xf32>
      %76 = vector.shape_cast %75 : vector<1xf32> to vector<1x1x1xf32>
      %77 = vector.extract %76[0, 0, 0] : f32 from vector<1x1x1xf32>
      %78 = tpu.iota {dimensions = array<i32: 2>} : vector<1x8x128xi32>
      %c0_i32_42 = arith.constant 0 : i32
      %79 = vector.broadcast %c0_i32_42 : i32 to vector<1x8x128xi32>
      %80 = arith.cmpi eq, %78, %79 : vector<1x8x128xi32>
      %c1_i32 = arith.constant 1 : i32
      %81 = vector.broadcast %c1_i32 : i32 to vector<1x8x128xi32>
      %82 = arith.cmpi eq, %78, %81 : vector<1x8x128xi32>
      %c2_i32 = arith.constant 2 : i32
      %83 = vector.broadcast %c2_i32 : i32 to vector<1x8x128xi32>
      %84 = arith.cmpi eq, %78, %83 : vector<1x8x128xi32>
      %cst_43 = arith.constant 0.000000e+00 : f32
      %85 = vector.broadcast %77 : f32 to vector<1x8x128xf32>
      %86 = vector.broadcast %cst_43 : f32 to vector<1x8x128xf32>
      %87 = arith.select %84, %85, %86 : vector<1x8x128xi1>, vector<1x8x128xf32>
      %88 = vector.broadcast %73 : f32 to vector<1x8x128xf32>
      %89 = arith.select %82, %88, %87 : vector<1x8x128xi1>, vector<1x8x128xf32>
      %90 = vector.broadcast %69 : f32 to vector<1x8x128xf32>
      %91 = arith.select %80, %90, %89 : vector<1x8x128xi1>, vector<1x8x128xf32>
      %c0_44 = arith.constant 0 : index
      %c0_45 = arith.constant 0 : index
      %c0_46 = arith.constant 0 : index
      %92 = vector.load %arg10[%c0_44, %c0_45, %c0_46] : memref<1x8x128xf32, #tpu.memory_space<vmem>>, vector<1x8x128xf32>
      tpu.vector_store %arg10[%c0_44, %c0_45, %c0_46], %91 {strides = array<i32>} : memref<1x8x128xf32, #tpu.memory_space<vmem>>, vector<1x8x128xf32>,
    } else {
    }
    return
  }
  func.func @transform_0(%arg0: i32, %arg1: i32) -> (i32, i32) {
    %c0_i32 = arith.constant 0 : i32
    %c0_i32_0 = arith.constant 0 : i32
    return %arg0, %c0_i32 : i32, i32
  }
  func.func @transform_1(%arg0: i32, %arg1: i32) -> (i32, i32) {
    %c0_i32 = arith.constant 0 : i32
    %c0_i32_0 = arith.constant 0 : i32
    return %arg0, %c0_i32 : i32, i32
  }
  func.func @transform_2(%arg0: i32, %arg1: i32) -> (i32, i32) {
    %c0_i32 = arith.constant 0 : i32
    %c0_i32_0 = arith.constant 0 : i32
    %c0_i32_1 = arith.constant 0 : i32
    return %c0_i32, %c0_i32_0 : i32, i32
  }
  func.func @transform_3(%arg0: i32, %arg1: i32) -> (i32, i32) {
    %c0_i32 = arith.constant 0 : i32
    %c0_i32_0 = arith.constant 0 : i32
    %c0_i32_1 = arith.constant 0 : i32
    return %c0_i32, %c0_i32_0 : i32, i32
  }
  func.func @transform_4(%arg0: i32, %arg1: i32) -> (i32, i32) {
    %c0_i32 = arith.constant 0 : i32
    %c0_i32_0 = arith.constant 0 : i32
    %c0_i32_1 = arith.constant 0 : i32
    return %c0_i32, %c0_i32_0 : i32, i32
  }
  func.func @transform_5(%arg0: i32, %arg1: i32) -> (i32, i32) {
    %c0_i32 = arith.constant 0 : i32
    %c0_i32_0 = arith.constant 0 : i32
    %c0_i32_1 = arith.constant 0 : i32
    return %c0_i32, %c0_i32_0 : i32, i32
  }
  func.func @transform_6(%arg0: i32, %arg1: i32) -> (i32, i32, i32) {
    %c0_i32 = arith.constant 0 : i32
    %c0_i32_0 = arith.constant 0 : i32
    %c0_i32_1 = arith.constant 0 : i32
    return %arg1, %c0_i32, %c0_i32_0 : i32, i32, i32
  }
  func.func @transform_7(%arg0: i32, %arg1: i32) -> (i32, i32) {
    %c0_i32 = arith.constant 0 : i32
    %c0_i32_0 = arith.constant 0 : i32
    return %c0_i32, %arg1 : i32, i32
  }
  func.func @transform_8(%arg0: i32, %arg1: i32) -> (i32, i32, i32) {
    %c0_i32 = arith.constant 0 : i32
    %c0_i32_0 = arith.constant 0 : i32
    %c0_i32_1 = arith.constant 0 : i32
    return %arg0, %c0_i32, %c0_i32_0 : i32, i32, i32
  }
}

</mosaic_0001>

<llo_original>
// kernel: tpu_custom_call.1
$region0: #{tpu_custom_call.1}
  #allocation0 [shape = 'u32[]', space=smem, size = 0x4, offset = 0x4, fixed_abs, tag = 'smem constant byte address 0x4 - core index']
  #allocation1 [shape = 'u32[144,128]{1,0:T(1,128)}', space=vmem, size = 0x12000, scoped, tag = 'internal scratch']
  #allocation2 [shape = 'bf16[16,128]{1,0:T(16,128)(2,1)}', space=vmem, size = 0x1000, scoped, tag = 'scratch operand']
  #allocation3 [shape = 'f32[16,128]{1,0:T(8,128)}', space=vmem, size = 0x2000, scoped, tag = 'scratch operand']
  #allocation4 [shape = 'f32[16,128]{1,0:T(8,128)}', space=vmem, size = 0x2000, scoped, tag = 'scratch operand']
  #allocation5 [shape = 'f32[16,128]{1,0:T(8,128)}', space=vmem, size = 0x2000, scoped, tag = 'scratch operand']
  %s0 = inlined_call_operand.vmem [shape: bf16[16,128], index: 0, kind: input, shape index: {}]
  %s1 = inlined_call_operand.vmem [shape: s32[16,1], index: 1, kind: input, shape index: {}]
  %s2 = inlined_call_operand.hbm [shape: bf16[128,128], index: 2, kind: input, shape index: {}]
  %s3 = inlined_call_operand.vmem [shape: f32[1,128], index: 3, kind: input, shape index: {}]
  %s4 = inlined_call_operand.vmem [shape: f32[1,128], index: 4, kind: input, shape index: {}]
  %s5 = inlined_call_operand.vmem [shape: f32[1,128], index: 5, kind: input, shape index: {}]
  %s6 = inlined_call_operand.hbm [shape: bf16[1,128,128], index: 6, kind: input, shape index: {}]
  %s7 = inlined_call_operand.vmem [shape: f32[1,128], index: 7, kind: input, shape index: {}]
  %s8 = inlined_call_operand.hbm [shape: f32[1,8,128], index: 8, kind: output, shape index: {}]
  %s9 = sld [smem:[#allocation0]]
  $region58: #{tpu_custom_call.1} parent=0
    _
  %s11 = ssub.s32 1, %s9
  %s12 = scalar_select 0, %s11, %s9
  $region1: #{tpu_custom_call.1} parent=0
    #allocation6 [shape = 'u8[32768]{0}', space=vmem, size = 0x8000, scoped, tag = 'input window, operand 2, single buffered']
    #allocation7 [shape = 's32[1]{0}', space=sflag, size = 0x4, scoped, tag = 'scoped memory for tpu_custom_call.1']
    #allocation8 [shape = 's32[1]{0}', space=sflag, size = 0x4, scoped, tag = 'scoped memory for tpu_custom_call.1']
    #allocation9 [shape = 'u8[32768]{0}', space=vmem, size = 0x8000, scoped, tag = 'input window, operand 6, single buffered']
    #allocation10 [shape = 's32[1]{0}', space=sflag, size = 0x4, scoped, tag = 'scoped memory for tpu_custom_call.1']
    #allocation11 [shape = 'u8[4096]{0}', space=vmem, size = 0x1000, scoped, tag = 'output window, operand 0, single buffered']
    %13 = vsyncpa [#allocation7], 0
    %14 = vsyncpa [#allocation10], 0
    %15 = vsyncpa [#allocation8], 0
    // Predicated region
    $region2: #{tpu_custom_call.1} parent=1 // pred_check
      _
    $region3: #{tpu_custom_call.1} parent=1 // pred_check_branch
      %17 = sbr.rel (0) target = $region5
    $region4: #{tpu_custom_call.1} parent=1 // pred_region
      _
    $region5: #{tpu_custom_call.1} parent=1 // pred_fallthru
      _
    // Predicated region
    $region6: #{tpu_custom_call.1} parent=1 // pred_check
      _
    $region7: #{tpu_custom_call.1} parent=1 // pred_check_branch
      %19 = sbr.rel (0) target = $region9
    $region8: #{tpu_custom_call.1} parent=1 // pred_region
      _
    $region9: #{tpu_custom_call.1} parent=1 // pred_fallthru
      _
    // Predicated region
    $region10: #{tpu_custom_call.1} parent=1 // pred_check
      _
    $region11: #{tpu_custom_call.1} parent=1 // pred_check_branch
      %21 = sbr.rel (0) target = $region13
    $region12: #{tpu_custom_call.1} parent=1 // pred_region
      %s23 = ssub.s32 1024, 1024
      %24 = vsyncadd [#allocation7], %s23
      %s25 = sshll.u32 [#allocation6], 4
      %s26 = int_to_ptr.vmem [resolvable:$true] %s25
      %31 = dma.hbm_to_vmem [thread:$0]  %s2, 1024, %s26, [#allocation7], 64, 64, 4
    $region13: #{tpu_custom_call.1} parent=1 // pred_fallthru
      _
    // Predicated region
    $region14: #{tpu_custom_call.1} parent=1 // pred_check
      _
    $region15: #{tpu_custom_call.1} parent=1 // pred_check_branch
      %33 = sbr.rel (0) target = $region17
    $region16: #{tpu_custom_call.1} parent=1 // pred_region
      _
    $region17: #{tpu_custom_call.1} parent=1 // pred_fallthru
      _
    // Predicated region
    $region18: #{tpu_custom_call.1} parent=1 // pred_check
      _
    $region19: #{tpu_custom_call.1} parent=1 // pred_check_branch
      %35 = sbr.rel (0) target = $region21
    $region20: #{tpu_custom_call.1} parent=1 // pred_region
      _
    $region21: #{tpu_custom_call.1} parent=1 // pred_fallthru
      _
    // Predicated region
    $region22: #{tpu_custom_call.1} parent=1 // pred_check
      _
    $region23: #{tpu_custom_call.1} parent=1 // pred_check_branch
      %37 = sbr.rel (0) target = $region25
    $region24: #{tpu_custom_call.1} parent=1 // pred_region
      _
    $region25: #{tpu_custom_call.1} parent=1 // pred_fallthru
      _
    // Predicated region
    $region26: #{tpu_custom_call.1} parent=1 // pred_check
      _
    $region27: #{tpu_custom_call.1} parent=1 // pred_check_branch
      %39 = sbr.rel (0) target = $region29
    $region28: #{tpu_custom_call.1} parent=1 // pred_region
      %s41 = ssub.s32 1024, 1024
      %42 = vsyncadd [#allocation10], %s41
      %s43 = sshll.u32 [#allocation9], 4
      %s44 = int_to_ptr.vmem [resolvable:$true] %s43
      %49 = dma.hbm_to_vmem [thread:$0]  %s6, 1024, %s44, [#allocation10], 64, 64, 4
    $region29: #{tpu_custom_call.1} parent=1 // pred_fallthru
      _
    // Predicated region
    $region30: #{tpu_custom_call.1} parent=1 // pred_check
      _
    $region31: #{tpu_custom_call.1} parent=1 // pred_check_branch
      %51 = sbr.rel (0) target = $region33
    $region32: #{tpu_custom_call.1} parent=1 // pred_region
      _
    $region33: #{tpu_custom_call.1} parent=1 // pred_fallthru
      _
    // Predicated region
    $region34: #{tpu_custom_call.1} parent=1 // pred_check
      _
    $region35: #{tpu_custom_call.1} parent=1 // pred_check_branch
      %53 = sbr.rel (0) target = $region37
    $region36: #{tpu_custom_call.1} parent=1 // pred_region
      %54 = dma.done [#allocation7], 1024
    $region37: #{tpu_custom_call.1} parent=1 // pred_fallthru
      _
    // Predicated region
    $region38: #{tpu_custom_call.1} parent=1 // pred_check
      _
    $region39: #{tpu_custom_call.1} parent=1 // pred_check_branch
      %56 = sbr.rel (0) target = $region41
    $region40: #{tpu_custom_call.1} parent=1 // pred_region
      %57 = dma.done [#allocation10], 1024
    $region41: #{tpu_custom_call.1} parent=1 // pred_fallthru
      _
    %p59 = scmp.eq.s32.totalorder 0, 0
    // Predicated region
    $region42: #{tpu_custom_call.1} parent=1 // pred_check
      %p60 = pneg %p59
    $region43: #{tpu_custom_call.1} parent=1 // pred_check_branch
      %62 = sbr.rel (%p60) target = $region45
    $region44: #{tpu_custom_call.1} parent=1 // pred_region
      %v63 = vld [vmem:[%s0] sm:$0xf]
      %v64 = vld [vmem:[%s0 + $0x4] sm:$0xf]
      %v65 = vld [vmem:[#allocation6] sm:$0xf]
      %v66 = vld [vmem:[#allocation6 + $0x4] sm:$0xf]
      %v67 = vld [vmem:[#allocation6 + $0x8] sm:$0xf]
      %v68 = vld [vmem:[#allocation6 + $0xc] sm:$0xf]
      %v69 = vld [vmem:[#allocation6 + $0x10] sm:$0xf]
      %v70 = vld [vmem:[#allocation6 + $0x14] sm:$0xf]
      %v71 = vld [vmem:[#allocation6 + $0x18] sm:$0xf]
      %v72 = vld [vmem:[#allocation6 + $0x1c] sm:$0xf]
      %v73 = vld [vmem:[#allocation6 + $0x20] sm:$0xf]
      %v74 = vld [vmem:[#allocation6 + $0x24] sm:$0xf]
      %v75 = vld [vmem:[#allocation6 + $0x28] sm:$0xf]
      %v76 = vld [vmem:[#allocation6 + $0x2c] sm:$0xf]
      %v77 = vld [vmem:[#allocation6 + $0x30] sm:$0xf]
      %v78 = vld [vmem:[#allocation6 + $0x34] sm:$0xf]
      %v79 = vld [vmem:[#allocation6 + $0x38] sm:$0xf]
      %v80 = vld [vmem:[#allocation6 + $0x3c] sm:$0xf]
      %v81 = vld [vmem:[%s3] sm:$0x1]
      %v83 = vlaneseq
      %v84 = vshrl.u32 %v83, 7
      %v85 = vsub.s32 0, %v84
      %v86 = vrot.slane %v81, %v85
      %v90 = vunpack.c.l.b16 %v63
      %v91 = vunpack.c.l.b16 %v64
      %v92 = vpack.c.b16 %v91, %v90
      %v110 = vunpack.c.l.b16 %v65
      %v111 = vunpack.c.l.b16 %v66
      %v112 = vunpack.c.l.b16 %v67
      %v113 = vunpack.c.l.b16 %v68
      %v114 = vunpack.c.l.b16 %v69
      %v115 = vunpack.c.l.b16 %v70
      %v116 = vunpack.c.l.b16 %v71
      %v117 = vunpack.c.l.b16 %v72
      %v118 = vunpack.c.l.b16 %v73
      %v119 = vunpack.c.l.b16 %v74
      %v120 = vunpack.c.l.b16 %v75
      %v121 = vunpack.c.l.b16 %v76
      %v122 = vunpack.c.l.b16 %v77
      %v123 = vunpack.c.l.b16 %v78
      %v124 = vunpack.c.l.b16 %v79
      %v125 = vunpack.c.l.b16 %v80
      %v126 = vpack.c.b16 %v111, %v110
      %v127 = vpack.c.b16 %v113, %v112
      %v128 = vpack.c.b16 %v115, %v114
      %v129 = vpack.c.b16 %v117, %v116
      %v130 = vpack.c.b16 %v119, %v118
      %v131 = vpack.c.b16 %v121, %v120
      %v132 = vpack.c.b16 %v123, %v122
      %v133 = vpack.c.b16 %v125, %v124
      %142 = vmatprep.subr.bf16.mxu0 0
      %143 = vmatpush1.bf16.msra.mxu0 %v126
      %144 = vmatprep.subr.bf16.mxu0 0
      %145 = vmatpush1.bf16.msra.mxu0 %v127
      %146 = vmatprep.subr.bf16.mxu0 0
      %147 = vmatpush1.bf16.msra.mxu0 %v128
      %148 = vmatprep.subr.bf16.mxu0 0
      %149 = vmatpush1.bf16.msra.mxu0 %v129
      %150 = vmatprep.subr.bf16.mxu0 0
      %151 = vmatpush1.bf16.msra.mxu0 %v130
      %152 = vmatprep.subr.bf16.mxu0 0
      %153 = vmatpush1.bf16.msra.mxu0 %v131
      %154 = vmatprep.subr.bf16.mxu0 0
      %155 = vmatpush1.bf16.msra.mxu0 %v132
      %156 = vmatprep.subr.bf16.mxu0 0
      %157 = vmatpush1.bf16.msra.mxu0 %v133
      %158 = vmatprep.subr.bf16.mxu0 0
      %159 = vmatpush1.bf16.msra.mxu0 0
      %160 = vmatprep.subr.bf16.mxu0 0
      %161 = vmatpush1.bf16.msra.mxu0 0
      %162 = vmatprep.subr.bf16.mxu0 0
      %163 = vmatpush1.bf16.msra.mxu0 0
      %164 = vmatprep.subr.bf16.mxu0 0
      %165 = vmatpush1.bf16.msra.mxu0 0
      %166 = vmatprep.subr.bf16.mxu0 0
      %167 = vmatpush1.bf16.msra.mxu0 0
      %168 = vmatprep.subr.bf16.mxu0 0
      %169 = vmatpush1.bf16.msra.mxu0 0
      %170 = vmatprep.subr.bf16.mxu0 0
      %171 = vmatpush1.bf16.msra.mxu0 0
      %172 = vmatprep.subr.bf16.mxu0 0
      %173 = vmatpush1.bf16.msra.mxu0 0
      %174 = vmatprep.mubr.bf16.mxu0 0
      %175 = vmatmul.mubr.bf16.gmra.mrb[0].mxu0 %v92
      %v176 = vpop.f32.mrb[0].mxu0
      %v177 = vadd.f32 %v86, %v176
      %v178 = vpop.f32.mrb[0].mxu0
      %v179 = vpop.f32.mrb[0].mxu0
      %v180 = vadd.f32 %v86, %v179
      %v181 = vpop.f32.mrb[0].mxu0
      %182 = vdwg.mxu0
      %v183 = vmul.f32 %v177, 0.5
      %v184 = vmul.f32 %v180, 0.5
      %v185 = vmul.f32 %v177, 0.70710677
      %v186 = vmul.f32 %v180, 0.70710677
      %v187 = verf.f32.pop %v185
      %v188 = verf.f32.pop %v186
      %v189 = vadd.f32 %v187, 1.0
      %v190 = vadd.f32 %v188, 1.0
      %v191 = vmul.f32 %v183, %v189
      %v192 = vmul.f32 %v184, %v190
      %v193 = vlaneseq
      %v194 = vand.u32 %v193, 127
      %vm195 = vcmp.lt.s32.totalorder %v194, 32
      %v196 = vsel %vm195, 1, 0
      %v197 = vcvt.s32.f32 %v196
      %v198 = vmul.f32 %v191, %v197
      %v199 = vmul.f32 %v192, %v197
      %200 = vadd.xlane.f32.xlu0 %v198
      %v201 = vpop.xlane.xlu0 %200
      %202 = vadd.xlane.f32.xlu0 %v199
      %v203 = vpop.xlane.xlu0 %202
      %v204 = vrcp.pop 32.0
      %v205 = vmul.f32 %v201, %v204
      %v206 = vmul.f32 %v203, %v204
      %v207 = vsub.f32 %v191, %v205
      %v208 = vsub.f32 %v192, %v206
      %v209 = vmul.f32 %v207, %v197
      %v210 = vmul.f32 %v208, %v197
      %v211 = vmul.f32 %v209, %v209
      %v212 = vmul.f32 %v210, %v210
      %213 = vadd.xlane.f32.xlu0 %v211
      %v214 = vpop.xlane.xlu0 %213
      %215 = vadd.xlane.f32.xlu0 %v212
      %v216 = vpop.xlane.xlu0 %215
      %v217 = vrcp.pop 31.0
      %v218 = vmul.f32 %v214, %v217
      %v219 = vmul.f32 %v216, %v217
      %v220 = vld [vmem:[%s4] sm:$0x1]
      %v222 = vlaneseq
      %v223 = vshrl.u32 %v222, 7
      %v224 = vsub.s32 0, %v223
      %v225 = vrot.slane %v220, %v224
      %v227 = vmul.f32 %v225, %v207
      %v228 = vmul.f32 %v225, %v208
      %v229 = vrsqrt.pop %v218
      %v230 = vmul.f32 %v218, %v229
      %vm231 = vcmp.eq.f32.partialorder %v218, inf
      %v232 = vsel %vm231, %v218, %v230
      %vm233 = vcmp.eq.f32.partialorder %v218, 0.0
      %v234 = vand.u32 %v218, 2147483648
      %v235 = vsel %vm233, %v234, %v232
      %v236 = vrsqrt.pop %v219
      %v237 = vmul.f32 %v219, %v236
      %vm238 = vcmp.eq.f32.partialorder %v219, inf
      %v239 = vsel %vm238, %v219, %v237
      %vm240 = vcmp.eq.f32.partialorder %v219, 0.0
      %v241 = vand.u32 %v219, 2147483648
      %v242 = vsel %vm240, %v241, %v239
      %v243 = vadd.f32 %v235, 1e-06
      %v244 = vadd.f32 %v242, 1e-06
      %v245 = vrcp.pop %v243
      %v246 = vmul.f32 %v227, %v245
      %v247 = vrcp.pop %v244
      %v248 = vmul.f32 %v228, %v247
      %v249 = vld [vmem:[%s5] sm:$0x1]
      %v251 = vlaneseq
      %v252 = vshrl.u32 %v251, 7
      %v253 = vsub.s32 0, %v252
      %v254 = vrot.slane %v249, %v253
      %v256 = vadd.f32 %v246, %v254
      %v257 = vadd.f32 %v248, %v254
      %v258 = vmul.f32 %v256, %v197
      %v259 = vmul.f32 %v257, %v197
      %v260 = vpack.c.bf16 %v259, %v258
      %261 = vst [vmem:[#allocation2] sm:$0xff] %v260
      %262 = vst [vmem:[#allocation3] sm:$0xff] -1e+30
      %263 = vst [vmem:[#allocation3 + $0x8] sm:$0xff] -1e+30
      %264 = vst [vmem:[#allocation4] sm:$0xff] 0.0
      %265 = vst [vmem:[#allocation4 + $0x8] sm:$0xff] 0.0
      %266 = vst [vmem:[#allocation5] sm:$0xff] 0.0
      %267 = vst [vmem:[#allocation5 + $0x8] sm:$0xff] 0.0
    $region45: #{tpu_custom_call.1} parent=1 // pred_fallthru
      _
    %v268 = vld [vmem:[#allocation2] sm:$0xff]
    %v269 = vld [vmem:[#allocation9] sm:$0xf]
    %v270 = vld [vmem:[#allocation9 + $0x4] sm:$0xf]
    %v271 = vld [vmem:[#allocation9 + $0x8] sm:$0xf]
    %v272 = vld [vmem:[#allocation9 + $0xc] sm:$0xf]
    %v273 = vld [vmem:[#allocation9 + $0x10] sm:$0xf]
    %v274 = vld [vmem:[#allocation9 + $0x14] sm:$0xf]
    %v275 = vld [vmem:[#allocation9 + $0x18] sm:$0xf]
    %v276 = vld [vmem:[#allocation9 + $0x1c] sm:$0xf]
    %v277 = vld [vmem:[#allocation9 + $0x20] sm:$0xf]
    %v278 = vld [vmem:[#allocation9 + $0x24] sm:$0xf]
    %v279 = vld [vmem:[#allocation9 + $0x28] sm:$0xf]
    %v280 = vld [vmem:[#allocation9 + $0x2c] sm:$0xf]
    %v281 = vld [vmem:[#allocation9 + $0x30] sm:$0xf]
    %v282 = vld [vmem:[#allocation9 + $0x34] sm:$0xf]
    %v283 = vld [vmem:[#allocation9 + $0x38] sm:$0xf]
    %v284 = vld [vmem:[#allocation9 + $0x3c] sm:$0xf]
    %v285 = vld [vmem:[%s7] sm:$0x1]
    %v287 = vlaneseq
    %v288 = vshrl.u32 %v287, 7
    %v289 = vsub.s32 0, %v288
    %v290 = vrot.slane %v285, %v289
    %v308 = vunpack.c.l.b16 %v269
    %v309 = vunpack.c.l.b16 %v270
    %v310 = vunpack.c.l.b16 %v271
    %v311 = vunpack.c.l.b16 %v272
    %v312 = vunpack.c.l.b16 %v273
    %v313 = vunpack.c.l.b16 %v274
    %v314 = vunpack.c.l.b16 %v275
    %v315 = vunpack.c.l.b16 %v276
    %v316 = vunpack.c.l.b16 %v277
    %v317 = vunpack.c.l.b16 %v278
    %v318 = vunpack.c.l.b16 %v279
    %v319 = vunpack.c.l.b16 %v280
    %v320 = vunpack.c.l.b16 %v281
    %v321 = vunpack.c.l.b16 %v282
    %v322 = vunpack.c.l.b16 %v283
    %v323 = vunpack.c.l.b16 %v284
    %v324 = vpack.c.b16 %v309, %v308
    %v325 = vpack.c.b16 %v311, %v310
    %v326 = vpack.c.b16 %v313, %v312
    %v327 = vpack.c.b16 %v315, %v314
    %v328 = vpack.c.b16 %v317, %v316
    %v329 = vpack.c.b16 %v319, %v318
    %v330 = vpack.c.b16 %v321, %v320
    %v331 = vpack.c.b16 %v323, %v322
    %340 = vmatprep.subr.bf16.mxu0 0
    %341 = vmatpush1.bf16.msra.mxu0 %v324
    %342 = vmatprep.subr.bf16.mxu0 0
    %343 = vmatpush1.bf16.msra.mxu0 %v325
    %344 = vmatprep.subr.bf16.mxu0 0
    %345 = vmatpush1.bf16.msra.mxu0 %v326
    %346 = vmatprep.subr.bf16.mxu0 0
    %347 = vmatpush1.bf16.msra.mxu0 %v327
    %348 = vmatprep.subr.bf16.mxu0 0
    %349 = vmatpush1.bf16.msra.mxu0 %v328
    %350 = vmatprep.subr.bf16.mxu0 0
    %351 = vmatpush1.bf16.msra.mxu0 %v329
    %352 = vmatprep.subr.bf16.mxu0 0
    %353 = vmatpush1.bf16.msra.mxu0 %v330
    %354 = vmatprep.subr.bf16.mxu0 0
    %355 = vmatpush1.bf16.msra.mxu0 %v331
    %356 = vmatprep.subr.bf16.mxu0 0
    %357 = vmatpush1.bf16.msra.mxu0 0
    %358 = vmatprep.subr.bf16.mxu0 0
    %359 = vmatpush1.bf16.msra.mxu0 0
    %360 = vmatprep.subr.bf16.mxu0 0
    %361 = vmatpush1.bf16.msra.mxu0 0
    %362 = vmatprep.subr.bf16.mxu0 0
    %363 = vmatpush1.bf16.msra.mxu0 0
    %364 = vmatprep.subr.bf16.mxu0 0
    %365 = vmatpush1.bf16.msra.mxu0 0
    %366 = vmatprep.subr.bf16.mxu0 0
    %367 = vmatpush1.bf16.msra.mxu0 0
    %368 = vmatprep.subr.bf16.mxu0 0
    %369 = vmatpush1.bf16.msra.mxu0 0
    %370 = vmatprep.subr.bf16.mxu0 0
    %371 = vmatpush1.bf16.msra.mxu0 0
    %372 = vmatprep.mubr.bf16.mxu0 0
    %373 = vmatmul.mubr.bf16.gmra.mrb[0].mxu0 %v268
    %v374 = vpop.f32.mrb[0].mxu0
    %v375 = vadd.f32 %v290, %v374
    %v376 = vpop.f32.mrb[0].mxu0
    %v377 = vpop.f32.mrb[0].mxu0
    %v378 = vadd.f32 %v290, %v377
    %v379 = vpop.f32.mrb[0].mxu0
    %380 = vdwg.mxu0
    %v381 = vld [vmem:[%s1] sm:$0xff]
    %v382 = vld [vmem:[%s1 + $0x8] sm:$0xff]
    %s383 = smul.u32 0, 128
    %v384 = vstv %s383
    %v385 = vsub.s32 %v381, %v384
    %v386 = vsub.s32 %v382, %v384
    %v387 = vlaneseq
    %v388 = vand.u32 %v387, 127
    %v389 = vld [vmem:[#allocation3] sm:$0xff]
    %v390 = vld [vmem:[#allocation3 + $0x8] sm:$0xff]
    %v391 = vmax.f32 %v389, %v375
    %v392 = vmax.f32 %v390, %v378
    %v393 = vld [vmem:[#allocation4] sm:$0xff]
    %v394 = vld [vmem:[#allocation4 + $0x8] sm:$0xff]
    %v395 = vsub.f32 %v389, %v391
    %v396 = vsub.f32 %v390, %v392
    %v397 = vmul.f32 %v395, 1.442695
    %v398 = vpow.pop %v397
    %v399 = vmul.f32 %v396, 1.442695
    %v400 = vpow.pop %v399
    %v401 = vmul.f32 %v393, %v398
    %v402 = vmul.f32 %v394, %v400
    %v403 = vld [vmem:[#allocation5] sm:$0xff]
    %v404 = vld [vmem:[#allocation5 + $0x8] sm:$0xff]
    %v405 = vsub.f32 %v375, %v391
    %v406 = vsub.f32 %v378, %v392
    %v407 = vmul.f32 %v405, 1.442695
    %v408 = vpow.pop %v407
    %v409 = vmul.f32 %v406, 1.442695
    %v410 = vpow.pop %v409
    %v411 = vadd.f32 %v401, %v408
    %v412 = vadd.f32 %v402, %v410
    %413 = vset.pattern.permute.xlu0 0
    %414 = vperm.xlu0 %413, %v385
    %v415 = vpop.permute.xlu0 %414
    %416 = vset.pattern.permute.xlu0 0
    %417 = vperm.xlu0 %416, %v386
    %v418 = vpop.permute.xlu0 %417
    %vm419 = vcmp.eq.s32.totalorder %v388, %v415
    %vm420 = vcmp.eq.s32.totalorder %v388, %v418
    %v421 = vsel %vm419, %v375, 0.0
    %v422 = vsel %vm420, %v378, 0.0
    %v423 = vadd.f32 %v403, %v421
    %v424 = vadd.f32 %v404, %v422
    %425 = vst [vmem:[#allocation3] sm:$0xff] %v391
    %426 = vst [vmem:[#allocation3 + $0x8] sm:$0xff] %v392
    %427 = vst [vmem:[#allocation4] sm:$0xff] %v411
    %428 = vst [vmem:[#allocation4 + $0x8] sm:$0xff] %v412
    %429 = vst [vmem:[#allocation5] sm:$0xff] %v423
    %430 = vst [vmem:[#allocation5 + $0x8] sm:$0xff] %v424
    // Predicated region
    $region46: #{tpu_custom_call.1} parent=1 // pred_check
      %p431 = pneg %p59
    $region47: #{tpu_custom_call.1} parent=1 // pred_check_branch
      %433 = sbr.rel (%p431) target = $region49
    $region48: #{tpu_custom_call.1} parent=1 // pred_region
      %v434 = vld [vmem:[%s1] sm:$0xff]
      %v435 = vld [vmem:[%s1 + $0x8] sm:$0xff]
      %vm436 = vcmp.gt.s32.totalorder %v434, 0
      %vm437 = vcmp.gt.s32.totalorder %v435, 0
      %v438 = vsel %vm436, 1, 0
      %v439 = vsel %vm437, 1, 0
      %v440 = vcvt.s32.f32 %v438
      %v441 = vcvt.s32.f32 %v439
      %v442 = vld [vmem:[#allocation3] sm:$0xff]
      %v443 = vld [vmem:[#allocation3 + $0x8] sm:$0xff]
      %444 = vmax.xlane.f32.xlu0 %v442
      %v445 = vpop.xlane.xlu0 %444
      %446 = vmax.xlane.f32.xlu0 %v443
      %v447 = vpop.xlane.xlu0 %446
      %v448 = vld [vmem:[#allocation4] sm:$0xff]
      %v449 = vld [vmem:[#allocation4 + $0x8] sm:$0xff]
      %v450 = vsub.f32 %v442, %v445
      %v451 = vsub.f32 %v443, %v447
      %v452 = vmul.f32 %v450, 1.442695
      %v453 = vpow.pop %v452
      %v454 = vmul.f32 %v451, 1.442695
      %v455 = vpow.pop %v454
      %v456 = vmul.f32 %v448, %v453
      %v457 = vmul.f32 %v449, %v455
      %458 = vadd.xlane.f32.xlu0 %v456
      %v459 = vpop.xlane.xlu0 %458
      %460 = vadd.xlane.f32.xlu0 %v457
      %v461 = vpop.xlane.xlu0 %460
      %v462 = vld [vmem:[#allocation5] sm:$0xff]
      %v463 = vld [vmem:[#allocation5 + $0x8] sm:$0xff]
      %464 = vadd.xlane.f32.xlu0 %v462
      %v465 = vpop.xlane.xlu0 %464
      %466 = vadd.xlane.f32.xlu0 %v463
      %v467 = vpop.xlane.xlu0 %466
      %v468 = vlog2.pop %v459
      %v469 = vmul.f32 %v468, 0.6931472
      %v470 = vlog2.pop %v461
      %v471 = vmul.f32 %v470, 0.6931472
      %v472 = vadd.f32 %v445, %v469
      %v473 = vadd.f32 %v447, %v471
      %v474 = vsub.f32 %v472, %v465
      %v475 = vsub.f32 %v473, %v467
      %vm476 = vcmp.eq.f32.partialorder %v465, %v445
      %vm477 = vcmp.eq.f32.partialorder %v467, %v447
      %v478 = vsel %vm476, 1, 0
      %v479 = vsel %vm477, 1, 0
      %v480 = vcvt.s32.f32 %v478
      %v481 = vcvt.s32.f32 %v479
      %v482 = vmul.f32 %v480, %v440
      %v483 = vmul.f32 %v481, %v441
      %v484 = vmul.f32 %v474, %v440
      %v485 = vmul.f32 %v475, %v441
      %vm486 = vcmask 7168
      %v487 = vsel %vm486, %v484, 0.0
      %v488 = vsel %vm486, %v485, 0.0
      %v489 = vadd.f32 %v487, %v488
      %490 = vadd.xlane.f32.xlu0 %v489
      %v491 = vpop.xlane.xlu0 %490
      %v492 = vrot.slane %v491, 4
      %v493 = vadd.f32 %v491, %v492
      %v494 = vrot.slane %v493, 2
      %v495 = vadd.f32 %v493, %v494
      %v496 = vrot.slane %v495, 1
      %v497 = vadd.f32 %v495, %v496
      %s498 = vtos %v497
      %v499 = vsel %vm486, %v482, 0.0
      %v500 = vsel %vm486, %v483, 0.0
      %v501 = vadd.f32 %v499, %v500
      %502 = vadd.xlane.f32.xlu0 %v501
      %v503 = vpop.xlane.xlu0 %502
      %v504 = vrot.slane %v503, 4
      %v505 = vadd.f32 %v503, %v504
      %v506 = vrot.slane %v505, 2
      %v507 = vadd.f32 %v505, %v506
      %v508 = vrot.slane %v507, 1
      %v509 = vadd.f32 %v507, %v508
      %s510 = vtos %v509
      %v511 = vsel %vm486, %v440, 0.0
      %v512 = vsel %vm486, %v441, 0.0
      %v513 = vadd.f32 %v511, %v512
      %514 = vadd.xlane.f32.xlu0 %v513
      %v515 = vpop.xlane.xlu0 %514
      %v516 = vrot.slane %v515, 4
      %v517 = vadd.f32 %v515, %v516
      %v518 = vrot.slane %v517, 2
      %v519 = vadd.f32 %v517, %v518
      %v520 = vrot.slane %v519, 1
      %v521 = vadd.f32 %v519, %v520
      %s522 = vtos %v521
      %vm523 = vcmp.eq.s32.totalorder %v388, 0
      %vm524 = vcmp.eq.s32.totalorder %v388, 1
      %vm525 = vcmp.eq.s32.totalorder %v388, 2
      %v526 = vstv %s522
      %v527 = vsel %vm525, %v526, 0.0
      %v528 = vstv %s510
      %v529 = vsel %vm524, %v528, %v527
      %v530 = vstv %s498
      %v531 = vsel %vm523, %v530, %v529
      %532 = vst [vmem:[#allocation11] sm:$0xff] %v531
    $region49: #{tpu_custom_call.1} parent=1 // pred_fallthru
      _
    // Predicated region
    $region50: #{tpu_custom_call.1} parent=1 // pred_check
      _
    $region51: #{tpu_custom_call.1} parent=1 // pred_check_branch
      %534 = sbr.rel (0) target = $region53
    $region52: #{tpu_custom_call.1} parent=1 // pred_region
      %s536 = ssub.s32 128, 128
      %537 = vsyncadd [#allocation8], %s536
      %s539 = sshll.u32 [#allocation11], 4
      %s540 = int_to_ptr.vmem [resolvable:$true] %s539
      %542 = dma.vmem_to_hbm [thread:$0]  %s540, 128, %s8, [#allocation8]
    $region53: #{tpu_custom_call.1} parent=1 // pred_fallthru
      _
    // Predicated region
    $region54: #{tpu_custom_call.1} parent=1 // pred_check
      _
    $region55: #{tpu_custom_call.1} parent=1 // pred_check_branch
      %544 = sbr.rel (0) target = $region57
    $region56: #{tpu_custom_call.1} parent=1 // pred_region
      %545 = dma.done [#allocation8], 128
    $region57: #{tpu_custom_call.1} parent=1 // pred_fallthru
      _
    %546 = vsyncpa [#allocation7], 1
    %547 = vsyncpa [#allocation10], 1
    %548 = vsyncpa [#allocation8], 1

</llo_original>
